<compile_context>
chip_gen: v5e
topology: v5e:2x2
jax: 0.10.0
libtpu: 0.0.40
codegen_flags: <defaults>
</compile_context>

<pallas_src>
import functools

import jax
import jax.numpy as jnp
from jax.experimental import pallas as pl
from jax.experimental.pallas import tpu as pltpu


def _round_up(x, m):
    return ((x + m - 1) // m) * m


# ----------------------------------------------------------------------------
# Fused multi-task loss kernel
# ----------------------------------------------------------------------------
def _fused_loss_kernel(*refs, has_subtype, has_survival, has_mutations,
                       alpha, gamma, w_subtype, w_survival, w_mutations, inv_mut_count):
    it = iter(refs)
    if has_subtype:
        logits_ref, labels_ref = next(it), next(it)
    if has_survival:
        risk_ref, event_ref, order_ref = next(it), next(it), next(it)
    if has_mutations:
        mut_logits_ref, mut_targets_ref = next(it), next(it)
    out_ref = next(it)          # packed (1, 128): [subtype, survival, mutations, total, 0...]
    msum_ref = next(it)         # (1, 1) running BCE sum

    i0, i1 = pl.program_id(0), pl.program_id(1)
    is_first = jnp.logical_and(i0 == 0, i1 == 0)
    is_last = jnp.logical_and(i0 == pl.num_programs(0) - 1,
                              i1 == pl.num_programs(1) - 1)

    # --- mutations: BCE-with-logits, tiled running sum ------------------------------------
    if has_mutations:
        @pl.when(is_first)
        def _init():
            msum_ref[...] = jnp.zeros_like(msum_ref)

        xm = mut_logits_ref[...].astype(jnp.float32)
        tm = mut_targets_ref[...].astype(jnp.float32)
        # Padded elements were filled with logit=-100, target=0 -> per-element BCE == 0.
        per = jnp.maximum(xm, 0.0) - xm * tm + jnp.log1p(jnp.exp(-jnp.abs(xm)))
        msum_ref[...] = msum_ref[...] + jnp.sum(per, keepdims=True)

    # --- subtype + survival + finalize (resident full blocks; last grid step only) ---------
    @pl.when(is_last)
    def _finalize():
        lane = jax.lax.broadcasted_iota(jnp.int32, (1, 128), 1)
        out_vec = jnp.zeros((1, 128), jnp.float32)
        total = jnp.zeros((1, 1), jnp.float32)

        if has_subtype:
            x = logits_ref[...].astype(jnp.float32)               # (B, C)
            lbl = labels_ref[...]                                 # (B, 1) int32
            b, c = x.shape
            m = jnp.max(x, axis=-1, keepdims=True)
            ex = jnp.exp(x - m)
            sumexp = jnp.sum(ex, axis=-1, keepdims=True)
            onehot = (jax.lax.broadcasted_iota(jnp.int32, (b, c), 1) == lbl).astype(jnp.float32)
            x_t = jnp.sum(x * onehot, axis=-1, keepdims=True)
            ce = (jnp.log(sumexp) + m) - x_t                      # per-sample CE, (B, 1)
            # pt = softmax prob of target class; reuse ex instead of a second exp(-ce) pass.
            pt = jnp.sum(ex * onehot, axis=-1, keepdims=True) * pl.reciprocal(sumexp, approx=True)
            one_minus_pt = 1.0 - pt
            if float(gamma) == 2.0:
                w = one_minus_pt * one_minus_pt                   # VPU mul, no pow on EUP
            else:
                w = jnp.maximum(one_minus_pt, 0.0) ** gamma       # clamp: pt can round > 1
            focal = alpha * w * ce
            subtype_loss = (0.7 * jnp.mean(ce, keepdims=True)
                            + 0.3 * jnp.mean(focal, keepdims=True))
            out_vec = jnp.where(lane == 0, subtype_loss, out_vec)
            total = total + w_subtype * subtype_loss

        if has_survival:
            r = risk_ref[...].astype(jnp.float32)                 # (1, B) lane-dense
            e = event_ref[...].astype(jnp.float32)                # (1, B)
            o = order_ref[...]                                    # (B, 1) int32 argsort(-time)
            b = r.shape[-1]
            lane_j = jax.lax.broadcasted_iota(jnp.int32, (b, b), 1)
            sub_i = jax.lax.broadcasted_iota(jnp.int32, (b, b), 0).astype(jnp.float32)
            perm = (o == lane_j).astype(jnp.float32)              # perm[i, j] = (o[i] == j)
            # In-kernel gather: exact f32 broadcast-multiply + reduce (no wrapper take/pad).
            sorted_r = jnp.sum(r * perm, axis=1, keepdims=True)   # (B, 1): r[o[i]]
            sorted_e = jnp.sum(e * perm, axis=1, keepdims=True)   # (B, 1): e[o[i]]
            rank = jnp.sum(sub_i * perm, axis=0, keepdims=True)   # (1, B): sorted position of j
            in_risk_set = (rank <= sub_i).astype(jnp.float32)     # (B, B): [rank[j] <= i]
            rmax = jnp.max(r, keepdims=True)                      # (1, 1): stabilize exp
            ex_r = jnp.exp(r - rmax)                              # (1, B)
            csum = jnp.sum(ex_r * in_risk_set, axis=1, keepdims=True)   # cumsum at sorted i
            term = sorted_r - (jnp.log(csum) + rmax)              # log partial-likelihood
            n_events = jnp.sum(e, keepdims=True)
            # NOTE: faithful to the torch reference -> NaN if the batch has zero events.
            survival_loss = -jnp.sum(sorted_e * term, keepdims=True) / n_events
            out_vec = jnp.where(lane == 1, survival_loss, out_vec)
            total = total + w_survival * survival_loss

        if has_mutations:
            mut_mean = msum_ref[...] * inv_mut_count              # (1, 1)
            out_vec = jnp.where(lane == 2, mut_mean, out_vec)
            total = total + w_mutations * mut_mean

        out_vec = jnp.where(lane == 3, total, out_vec)
        out_ref[...] = out_vec


# ----------------------------------------------------------------------------
# MultiTaskLoss forward (mirrors the PyTorch module)
# ----------------------------------------------------------------------------
def multi_task_loss(predictions, targets, task_weights, *, alpha=0.25, gamma=2.0):
    has_subtype = 'molecular_subtype' in predictions
    has_survival = 'survival' in predictions and 'survival' in targets
    has_mutations = 'mutations' in predictions and 'mutations' in targets

    if not (has_subtype or has_survival or has_mutations):
        return jnp.float32(0.0), {}

    const_map = lambda i, j: (0, 0)
    inputs, in_specs = [], []

    if has_subtype:
        logits = predictions['molecular_subtype']                        # (B, C); kernel casts
        labels = targets['molecular_subtype'].reshape(-1, 1).astype(jnp.int32)
        inputs += [logits, labels]
        in_specs += [pl.BlockSpec(logits.shape, const_map),
                     pl.BlockSpec(labels.shape, const_map)]

    if has_survival:
        # Only the data-dependent argsort stays in JAX glue; the gather happens in-kernel.
        t = targets['survival_time'].reshape(-1)
        order = jnp.argsort(-t).astype(jnp.int32).reshape(-1, 1)         # (B, 1) desc-time idx
        risk = predictions['survival'].reshape(1, -1)                    # (1, B) lane-dense
        event = targets['survival_event'].reshape(1, -1)                 # (1, B)
        inputs += [risk, event, order]
        in_specs += [pl.BlockSpec(risk.shape, const_map),
                     pl.BlockSpec(event.shape, const_map),
                     pl.BlockSpec(order.shape, const_map)]

    inv_mut_count = 0.0
    grid = (1, 1)
    if has_mutations:
        ml, mt = predictions['mutations'], targets['mutations']          # bf16/int8 inputs OK
        b, mdim = ml.shape
        inv_mut_count = 1.0 / float(b * mdim)
        if b <= 256 and mdim <= 2048:
            tb, tm = b, mdim                                             # single full block
        else:
            tb = 256 if b > 256 else _round_up(b, 8)
            tm = 2048 if mdim > 2048 else _round_up(mdim, 128)
            bp, mp = _round_up(b, tb), _round_up(mdim, tm)
            # Pad with logit=-100 / target=0 -> exactly zero BCE contribution per pad element.
            ml = jnp.pad(ml, ((0, bp - b), (0, mp - mdim)), constant_values=-100.0)
            mt = jnp.pad(mt, ((0, bp - b), (0, mp - mdim)))
            grid = (bp // tb, mp // tm)
        inputs += [ml, mt]
        in_specs += [pl.BlockSpec((tb, tm), lambda i, j: (i, j)),
                     pl.BlockSpec((tb, tm), lambda i, j: (i, j))]

    kernel = functools.partial(
        _fused_loss_kernel,
        has_subtype=has_subtype, has_survival=has_survival, has_mutations=has_mutations,
        alpha=float(alpha), gamma=float(gamma),
        w_subtype=float(task_weights.get('molecular_subtype', 1.0)),
        w_survival=float(task_weights.get('survival', 0.2)),
        w_mutations=float(task_weights.get('mutations', 0.2)),
        inv_mut_count=inv_mut_count,
    )

    out = pl.pallas_call(
        kernel,
        grid=grid,
        in_specs=in_specs,
        out_specs=pl.BlockSpec((1, 128), const_map),
        out_shape=jax.ShapeDtypeStruct((1, 128), jnp.float32),
        scratch_shapes=[pltpu.VMEM((1, 1), jnp.float32)],
        compiler_params=pltpu.CompilerParams(
            # Shared accumulator/output across both grid axes -> both "arbitrary".
            dimension_semantics=("arbitrary", "arbitrary"),
            # Fits <= (256, 2048) f32 tiles (2 arrays, double-buffered) on v5e/v6e/v7x.
            vmem_limit_bytes=32 * 1024 * 1024,
        ),
    )(*inputs)

    task_losses = {}
    if has_subtype:
        task_losses['molecular_subtype'] = out[0, 0]
    if has_survival:
        task_losses['survival'] = out[0, 1]
    if has_mutations:
        task_losses['mutations'] = out[0, 2]
    total_loss = out[0, 3]
    return total_loss, task_losses


if __name__ == "__main__":
    key = jax.random.PRNGKey(0)
    k1, k2, k3, k4, k5, k6, k7 = jax.random.split(key, 7)

    B, C, M = 8, 4, 16  # batch, subtype classes, mutation markers

    surv_time = jax.random.uniform(k5, (B,), jnp.float32, 0.1, 10.0)
    surv_event = (jax.random.uniform(k6, (B,)) > 0.4).astype(jnp.float32)

    predictions = {
        'molecular_subtype': jax.random.normal(k1, (B, C), jnp.float32),
        'survival': jax.random.normal(k2, (B,), jnp.float32),
        'mutations': jax.random.normal(k3, (B, M), jnp.float32),
    }
    targets = {
        'molecular_subtype': jax.random.randint(k4, (B,), 0, C, jnp.int32),
        'survival': surv_time,            # reference gates the Cox branch on this key
        'survival_time': surv_time,
        'survival_event': surv_event,
        'mutations': (jax.random.uniform(k7, (B, M)) > 0.5).astype(jnp.float32),
    }
    task_weights = {'molecular_subtype': 1.0, 'survival': 0.2, 'mutations': 0.2}

    total, per_task = multi_task_loss(predictions, targets, task_weights)
    total = jax.block_until_ready(total)
    for v in per_task.values():
        jax.block_until_ready(v)

    print("KERNEL_OK")
</pallas_src>

<mosaic_0001>
module attributes {stable_mosaic.version = 11 : i64} {
  func.func @_fused_loss_kernel(%arg0: i32, %arg1: i32, %arg2: memref<8x4xf32, #tpu.memory_space<vmem>>, %arg3: memref<8x1xi32, #tpu.memory_space<vmem>>, %arg4: memref<1x8xf32, #tpu.memory_space<vmem>>, %arg5: memref<1x8xf32, #tpu.memory_space<vmem>>, %arg6: memref<8x1xi32, #tpu.memory_space<vmem>>, %arg7: memref<8x16xf32, #tpu.memory_space<vmem>>, %arg8: memref<8x16xf32, #tpu.memory_space<vmem>>, %arg9: memref<1x128xf32, #tpu.memory_space<vmem>>, %arg10: memref<1x1xf32, #tpu.memory_space<vmem>>) attributes {dimension_semantics = [#tpu.dimension_semantics<arbitrary>, #tpu.dimension_semantics<arbitrary>], iteration_bounds = array<i64: 1, 1>, scalar_prefetch = 0 : i64, scratch_operands = 1 : i64, tpu.core_type = #tpu.core_type<tc>, window_params = [{pipeline_mode = #tpu.pipeline_mode<synchronous>, transform_indices = @transform_0, window_bounds = array<i64: 8, 4>}, {pipeline_mode = #tpu.pipeline_mode<synchronous>, transform_indices = @transform_1, window_bounds = array<i64: 8, 1>}, {pipeline_mode = #tpu.pipeline_mode<synchronous>, transform_indices = @transform_2, window_bounds = array<i64: 1, 8>}, {pipeline_mode = #tpu.pipeline_mode<synchronous>, transform_indices = @transform_3, window_bounds = array<i64: 1, 8>}, {pipeline_mode = #tpu.pipeline_mode<synchronous>, transform_indices = @transform_4, window_bounds = array<i64: 8, 1>}, {transform_indices = @transform_5, window_bounds = array<i64: 8, 16>}, {transform_indices = @transform_6, window_bounds = array<i64: 8, 16>}, {pipeline_mode = #tpu.pipeline_mode<synchronous>, transform_indices = @transform_7, window_bounds = array<i64: 1, 128>}]} {
    %c0_i32 = arith.constant 0 : i32
    %0 = arith.cmpi eq, %arg0, %c0_i32 : i32
    %c0_i32_0 = arith.constant 0 : i32
    %1 = arith.cmpi eq, %arg1, %c0_i32_0 : i32
    %2 = arith.andi %0, %1 : i1
    %c0_i32_1 = arith.constant 0 : i32
    %3 = arith.cmpi eq, %arg0, %c0_i32_1 : i32
    %c0_i32_2 = arith.constant 0 : i32
    %4 = arith.cmpi eq, %arg1, %c0_i32_2 : i32
    %5 = arith.andi %3, %4 : i1
    %6 = arith.extui %2 : i1 to i32
    %c0_i32_3 = arith.constant 0 : i32
    %7 = arith.cmpi ne, %6, %c0_i32_3 : i32
    scf.if %7 {
      %cst_14 = arith.constant 0.000000e+00 : f32
      %30 = vector.broadcast %cst_14 : f32 to vector<1x1xf32>
      %c0_15 = arith.constant 0 : index
      %c0_16 = arith.constant 0 : index
      %31 = vector.load %arg10[%c0_15, %c0_16] : memref<1x1xf32, #tpu.memory_space<vmem>>, vector<1x1xf32>
      tpu.vector_store %arg10[%c0_15, %c0_16], %30 {strides = array<i32>} : memref<1x1xf32, #tpu.memory_space<vmem>>, vector<1x1xf32>,
    } else {
    }
    %c0 = arith.constant 0 : index
    %c0_4 = arith.constant 0 : index
    %8 = vector.load %arg7[%c0, %c0_4] : memref<8x16xf32, #tpu.memory_space<vmem>>, vector<8x16xf32>
    %c0_5 = arith.constant 0 : index
    %c0_6 = arith.constant 0 : index
    %9 = vector.load %arg8[%c0_5, %c0_6] : memref<8x16xf32, #tpu.memory_space<vmem>>, vector<8x16xf32>
    %cst = arith.constant 0.000000e+00 : f32
    %10 = vector.broadcast %cst : f32 to vector<8x16xf32>
    %11 = arith.maximumf %8, %10 : vector<8x16xf32>
    %12 = arith.mulf %8, %9 : vector<8x16xf32>
    %13 = arith.subf %11, %12 : vector<8x16xf32>
    %14 = math.absf %8 : vector<8x16xf32>
    %cst_7 = arith.constant 0.000000e+00 : f32
    %15 = vector.broadcast %cst_7 : f32 to vector<8x16xf32>
    %16 = arith.subf %15, %14 : vector<8x16xf32>
    %17 = math.exp %16 : vector<8x16xf32>
    %18 = math.log1p %17 : vector<8x16xf32>
    %19 = arith.addf %13, %18 : vector<8x16xf32>
    %c0_8 = arith.constant 0 : index
    %c0_9 = arith.constant 0 : index
    %20 = vector.load %arg10[%c0_8, %c0_9] : memref<1x1xf32, #tpu.memory_space<vmem>>, vector<1x1xf32>
    %21 = vector.shape_cast %19 : vector<8x16xf32> to vector<1x8x16xf32>
    %cst_10 = arith.constant dense<0.000000e+00> : vector<1xf32>
    %22 = vector.multi_reduction <add>, %21, %cst_10 [1, 2] : vector<1x8x16xf32> to vector<1xf32>
    %23 = vector.shape_cast %22 : vector<1xf32> to vector<1x1x1xf32>
    %24 = vector.extract %23[0, 0, 0] : f32 from vector<1x1x1xf32>
    %25 = vector.broadcast %24 : f32 to vector<1x1xf32>
    %26 = arith.addf %20, %25 : vector<1x1xf32>
    %c0_11 = arith.constant 0 : index
    %c0_12 = arith.constant 0 : index
    %27 = vector.load %arg10[%c0_11, %c0_12] : memref<1x1xf32, #tpu.memory_space<vmem>>, vector<1x1xf32>
    tpu.vector_store %arg10[%c0_11, %c0_12], %26 {strides = array<i32>} : memref<1x1xf32, #tpu.memory_space<vmem>>, vector<1x1xf32>,
    %28 = arith.extui %5 : i1 to i32
    %c0_i32_13 = arith.constant 0 : i32
    %29 = arith.cmpi ne, %28, %c0_i32_13 : i32
    scf.if %29 {
      %30 = tpu.iota {dimensions = array<i32: 1>} : vector<1x128xi32>
      %cst_14 = arith.constant 0.000000e+00 : f32
      %31 = vector.broadcast %cst_14 : f32 to vector<1x128xf32>
      %cst_15 = arith.constant 0.000000e+00 : f32
      %32 = vector.broadcast %cst_15 : f32 to vector<1x1xf32>
      %c0_16 = arith.constant 0 : index
      %c0_17 = arith.constant 0 : index
      %33 = vector.load %arg2[%c0_16, %c0_17] : memref<8x4xf32, #tpu.memory_space<vmem>>, vector<8x4xf32>
      %c0_18 = arith.constant 0 : index
      %c0_19 = arith.constant 0 : index
      %34 = vector.load %arg3[%c0_18, %c0_19] : memref<8x1xi32, #tpu.memory_space<vmem>>, vector<8x1xi32>
      %cst_20 = arith.constant dense<0xFF800000> : vector<8xf32>
      %35 = vector.multi_reduction <maximumf>, %33, %cst_20 [1] : vector<8x4xf32> to vector<8xf32>
      %36 = vector.shape_cast %35 : vector<8xf32> to vector<8x1xf32>
      %37 = vector.broadcast %36 : vector<8x1xf32> to vector<8x4xf32>
      %38 = arith.subf %33, %37 : vector<8x4xf32>
      %39 = math.exp %38 : vector<8x4xf32>
      %cst_21 = arith.constant dense<0.000000e+00> : vector<8xf32>
      %40 = vector.multi_reduction <add>, %39, %cst_21 [1] : vector<8x4xf32> to vector<8xf32>
      %41 = vector.shape_cast %40 : vector<8xf32> to vector<8x1xf32>
      %42 = tpu.iota {dimensions = array<i32: 1>} : vector<8x4xi32>
      %43 = vector.broadcast %34 : vector<8x1xi32> to vector<8x4xi32>
      %44 = arith.cmpi eq, %42, %43 : vector<8x4xi32>
      %45 = arith.extui %44 : vector<8x4xi1> to vector<8x4xi32>
      %46 = arith.sitofp %45 : vector<8x4xi32> to vector<8x4xf32>
      %47 = arith.mulf %33, %46 : vector<8x4xf32>
      %cst_22 = arith.constant dense<0.000000e+00> : vector<8xf32>
      %48 = vector.multi_reduction <add>, %47, %cst_22 [1] : vector<8x4xf32> to vector<8xf32>
      %49 = vector.shape_cast %48 : vector<8xf32> to vector<8x1xf32>
      %50 = math.log %41 : vector<8x1xf32>
      %51 = arith.addf %50, %36 : vector<8x1xf32>
      %52 = arith.subf %51, %49 : vector<8x1xf32>
      %53 = arith.mulf %39, %46 : vector<8x4xf32>
      %cst_23 = arith.constant dense<0.000000e+00> : vector<8xf32>
      %54 = vector.multi_reduction <add>, %53, %cst_23 [1] : vector<8x4xf32> to vector<8xf32>
      %55 = vector.shape_cast %54 : vector<8xf32> to vector<8x1xf32>
      %56 = tpu.reciprocal %41 {approx = true} : vector<8x1xf32> -> vector<8x1xf32>
      %57 = arith.mulf %55, %56 : vector<8x1xf32>
      %cst_24 = arith.constant 1.000000e+00 : f32
      %58 = vector.broadcast %cst_24 : f32 to vector<8x1xf32>
      %59 = arith.subf %58, %57 : vector<8x1xf32>
      %60 = arith.mulf %59, %59 : vector<8x1xf32>
      %cst_25 = arith.constant 2.500000e-01 : f32
      %61 = vector.broadcast %cst_25 : f32 to vector<8x1xf32>
      %62 = arith.mulf %61, %60 : vector<8x1xf32>
      %63 = arith.mulf %62, %52 : vector<8x1xf32>
      %64 = vector.shape_cast %52 : vector<8x1xf32> to vector<1x8x1xf32>
      %cst_26 = arith.constant dense<0.000000e+00> : vector<1xf32>
      %65 = vector.multi_reduction <add>, %64, %cst_26 [1, 2] : vector<1x8x1xf32> to vector<1xf32>
      %66 = vector.shape_cast %65 : vector<1xf32> to vector<1x1x1xf32>
      %67 = vector.extract %66[0, 0, 0] : f32 from vector<1x1x1xf32>
      %68 = vector.broadcast %67 : f32 to vector<1x1xf32>
      %cst_27 = arith.constant 8.000000e+00 : f32
      %69 = vector.broadcast %cst_27 : f32 to vector<1x1xf32>
      %70 = arith.divf %68, %69 : vector<1x1xf32>
      %cst_28 = arith.constant 0.699999988 : f32
      %71 = vector.broadcast %cst_28 : f32 to vector<1x1xf32>
      %72 = arith.mulf %71, %70 : vector<1x1xf32>
      %73 = vector.shape_cast %63 : vector<8x1xf32> to vector<1x8x1xf32>
      %cst_29 = arith.constant dense<0.000000e+00> : vector<1xf32>
      %74 = vector.multi_reduction <add>, %73, %cst_29 [1, 2] : vector<1x8x1xf32> to vector<1xf32>
      %75 = vector.shape_cast %74 : vector<1xf32> to vector<1x1x1xf32>
      %76 = vector.extract %75[0, 0, 0] : f32 from vector<1x1x1xf32>
      %77 = vector.broadcast %76 : f32 to vector<1x1xf32>
      %cst_30 = arith.constant 8.000000e+00 : f32
      %78 = vector.broadcast %cst_30 : f32 to vector<1x1xf32>
      %79 = arith.divf %77, %78 : vector<1x1xf32>
      %cst_31 = arith.constant 3.000000e-01 : f32
      %80 = vector.broadcast %cst_31 : f32 to vector<1x1xf32>
      %81 = arith.mulf %80, %79 : vector<1x1xf32>
      %82 = arith.addf %72, %81 : vector<1x1xf32>
      %c0_i32_32 = arith.constant 0 : i32
      %83 = vector.broadcast %c0_i32_32 : i32 to vector<1x128xi32>
      %84 = arith.cmpi eq, %30, %83 : vector<1x128xi32>
      %85 = vector.shape_cast %82 : vector<1x1xf32> to vector<1x1xf32>
      %86 = vector.broadcast %85 : vector<1x1xf32> to vector<1x128xf32>
      %87 = arith.select %84, %86, %31 : vector<1x128xi1>, vector<1x128xf32>
      %cst_33 = arith.constant 1.000000e+00 : f32
      %88 = vector.broadcast %cst_33 : f32 to vector<1x1xf32>
      %89 = arith.mulf %88, %82 : vector<1x1xf32>
      %90 = arith.addf %32, %89 : vector<1x1xf32>
      %c0_34 = arith.constant 0 : index
      %c0_35 = arith.constant 0 : index
      %91 = vector.load %arg4[%c0_34, %c0_35] : memref<1x8xf32, #tpu.memory_space<vmem>>, vector<1x8xf32>
      %c0_36 = arith.constant 0 : index
      %c0_37 = arith.constant 0 : index
      %92 = vector.load %arg5[%c0_36, %c0_37] : memref<1x8xf32, #tpu.memory_space<vmem>>, vector<1x8xf32>
      %c0_38 = arith.constant 0 : index
      %c0_39 = arith.constant 0 : index
      %93 = vector.load %arg6[%c0_38, %c0_39] : memref<8x1xi32, #tpu.memory_space<vmem>>, vector<8x1xi32>
      %94 = tpu.iota {dimensions = array<i32: 1>} : vector<8x8xi32>
      %95 = tpu.iota {dimensions = array<i32: 0>} : vector<8x8xi32>
      %96 = arith.sitofp %95 : vector<8x8xi32> to vector<8x8xf32>
      %97 = vector.broadcast %93 : vector<8x1xi32> to vector<8x8xi32>
      %98 = arith.cmpi eq, %97, %94 : vector<8x8xi32>
      %99 = arith.extui %98 : vector<8x8xi1> to vector<8x8xi32>
      %100 = arith.sitofp %99 : vector<8x8xi32> to vector<8x8xf32>
      %101 = vector.broadcast %91 : vector<1x8xf32> to vector<8x8xf32>
      %102 = arith.mulf %101, %100 : vector<8x8xf32>
      %cst_40 = arith.constant dense<0.000000e+00> : vector<8xf32>
      %103 = vector.multi_reduction <add>, %102, %cst_40 [1] : vector<8x8xf32> to vector<8xf32>
      %104 = vector.shape_cast %103 : vector<8xf32> to vector<8x1xf32>
      %105 = vector.broadcast %92 : vector<1x8xf32> to vector<8x8xf32>
      %106 = arith.mulf %105, %100 : vector<8x8xf32>
      %cst_41 = arith.constant dense<0.000000e+00> : vector<8xf32>
      %107 = vector.multi_reduction <add>, %106, %cst_41 [1] : vector<8x8xf32> to vector<8xf32>
      %108 = vector.shape_cast %107 : vector<8xf32> to vector<8x1xf32>
      %109 = arith.mulf %96, %100 : vector<8x8xf32>
      %cst_42 = arith.constant dense<0.000000e+00> : vector<8xf32>
      %110 = vector.multi_reduction <add>, %109, %cst_42 [0] : vector<8x8xf32> to vector<8xf32>
      %111 = vector.shape_cast %110 : vector<8xf32> to vector<1x8xf32>
      %112 = vector.broadcast %111 : vector<1x8xf32> to vector<8x8xf32>
      %113 = arith.cmpf ole, %112, %96 : vector<8x8xf32>
      %114 = arith.extui %113 : vector<8x8xi1> to vector<8x8xi32>
      %115 = arith.sitofp %114 : vector<8x8xi32> to vector<8x8xf32>
      %116 = vector.shape_cast %91 : vector<1x8xf32> to vector<1x1x8xf32>
      %cst_43 = arith.constant dense<0xFF800000> : vector<1xf32>
      %117 = vector.multi_reduction <maximumf>, %116, %cst_43 [1, 2] : vector<1x1x8xf32> to vector<1xf32>
      %118 = vector.shape_cast %117 : vector<1xf32> to vector<1x1x1xf32>
      %119 = vector.extract %118[0, 0, 0] : f32 from vector<1x1x1xf32>
      %120 = vector.broadcast %119 : f32 to vector<1x1xf32>
      %121 = vector.broadcast %120 : vector<1x1xf32> to vector<1x8xf32>
      %122 = arith.subf %91, %121 : vector<1x8xf32>
      %123 = math.exp %122 : vector<1x8xf32>
      %124 = vector.broadcast %123 : vector<1x8xf32> to vector<8x8xf32>
      %125 = arith.mulf %124, %115 : vector<8x8xf32>
      %cst_44 = arith.constant dense<0.000000e+00> : vector<8xf32>
      %126 = vector.multi_reduction <add>, %125, %cst_44 [1] : vector<8x8xf32> to vector<8xf32>
      %127 = vector.shape_cast %126 : vector<8xf32> to vector<8x1xf32>
      %128 = math.log %127 : vector<8x1xf32>
      %129 = vector.broadcast %120 : vector<1x1xf32> to vector<8x1xf32>
      %130 = arith.addf %128, %129 : vector<8x1xf32>
      %131 = arith.subf %104, %130 : vector<8x1xf32>
      %132 = vector.shape_cast %92 : vector<1x8xf32> to vector<1x1x8xf32>
      %cst_45 = arith.constant dense<0.000000e+00> : vector<1xf32>
      %133 = vector.multi_reduction <add>, %132, %cst_45 [1, 2] : vector<1x1x8xf32> to vector<1xf32>
      %134 = vector.shape_cast %133 : vector<1xf32> to vector<1x1x1xf32>
      %135 = vector.extract %134[0, 0, 0] : f32 from vector<1x1x1xf32>
      %136 = vector.broadcast %135 : f32 to vector<1x1xf32>
      %137 = arith.mulf %108, %131 : vector<8x1xf32>
      %138 = vector.shape_cast %137 : vector<8x1xf32> to vector<1x8x1xf32>
      %cst_46 = arith.constant dense<0.000000e+00> : vector<1xf32>
      %139 = vector.multi_reduction <add>, %138, %cst_46 [1, 2] : vector<1x8x1xf32> to vector<1xf32>
      %140 = vector.shape_cast %139 : vector<1xf32> to vector<1x1x1xf32>
      %141 = vector.extract %140[0, 0, 0] : f32 from vector<1x1x1xf32>
      %142 = vector.broadcast %141 : f32 to vector<1x1xf32>
      %cst_47 = arith.constant 0.000000e+00 : f32
      %143 = vector.broadcast %cst_47 : f32 to vector<1x1xf32>
      %144 = arith.subf %143, %142 : vector<1x1xf32>
      %145 = arith.divf %144, %136 : vector<1x1xf32>
      %c1_i32 = arith.constant 1 : i32
      %146 = vector.broadcast %c1_i32 : i32 to vector<1x128xi32>
      %147 = arith.cmpi eq, %30, %146 : vector<1x128xi32>
      %148 = vector.shape_cast %145 : vector<1x1xf32> to vector<1x1xf32>
      %149 = vector.broadcast %148 : vector<1x1xf32> to vector<1x128xf32>
      %150 = arith.select %147, %149, %87 : vector<1x128xi1>, vector<1x128xf32>
      %cst_48 = arith.constant 2.000000e-01 : f32
      %151 = vector.broadcast %cst_48 : f32 to vector<1x1xf32>
      %152 = arith.mulf %151, %145 : vector<1x1xf32>
      %153 = arith.addf %90, %152 : vector<1x1xf32>
      %c0_49 = arith.constant 0 : index
      %c0_50 = arith.constant 0 : index
      %154 = vector.load %arg10[%c0_49, %c0_50] : memref<1x1xf32, #tpu.memory_space<vmem>>, vector<1x1xf32>
      %cst_51 = arith.constant 7.812500e-03 : f32
      %155 = vector.broadcast %cst_51 : f32 to vector<1x1xf32>
      %156 = arith.mulf %154, %155 : vector<1x1xf32>
      %c2_i32 = arith.constant 2 : i32
      %157 = vector.broadcast %c2_i32 : i32 to vector<1x128xi32>
      %158 = arith.cmpi eq, %30, %157 : vector<1x128xi32>
      %159 = vector.shape_cast %156 : vector<1x1xf32> to vector<1x1xf32>
      %160 = vector.broadcast %159 : vector<1x1xf32> to vector<1x128xf32>
      %161 = arith.select %158, %160, %150 : vector<1x128xi1>, vector<1x128xf32>
      %cst_52 = arith.constant 2.000000e-01 : f32
      %162 = vector.broadcast %cst_52 : f32 to vector<1x1xf32>
      %163 = arith.mulf %162, %156 : vector<1x1xf32>
      %164 = arith.addf %153, %163 : vector<1x1xf32>
      %c3_i32 = arith.constant 3 : i32
      %165 = vector.broadcast %c3_i32 : i32 to vector<1x128xi32>
      %166 = arith.cmpi eq, %30, %165 : vector<1x128xi32>
      %167 = vector.shape_cast %164 : vector<1x1xf32> to vector<1x1xf32>
      %168 = vector.broadcast %167 : vector<1x1xf32> to vector<1x128xf32>
      %169 = arith.select %166, %168, %161 : vector<1x128xi1>, vector<1x128xf32>
      %c0_53 = arith.constant 0 : index
      %c0_54 = arith.constant 0 : index
      %170 = vector.load %arg9[%c0_53, %c0_54] : memref<1x128xf32, #tpu.memory_space<vmem>>, vector<1x128xf32>
      tpu.vector_store %arg9[%c0_53, %c0_54], %169 {strides = array<i32>} : memref<1x128xf32, #tpu.memory_space<vmem>>, vector<1x128xf32>,
    } else {
    }
    return
  }
  func.func @transform_0(%arg0: i32, %arg1: i32) -> (i32, i32) {
    %c0_i32 = arith.constant 0 : i32
    %c0_i32_0 = arith.constant 0 : i32
    %c0_i32_1 = arith.constant 0 : i32
    return %c0_i32, %c0_i32_0 : i32, i32
  }
  func.func @transform_1(%arg0: i32, %arg1: i32) -> (i32, i32) {
    %c0_i32 = arith.constant 0 : i32
    %c0_i32_0 = arith.constant 0 : i32
    %c0_i32_1 = arith.constant 0 : i32
    return %c0_i32, %c0_i32_0 : i32, i32
  }
  func.func @transform_2(%arg0: i32, %arg1: i32) -> (i32, i32) {
    %c0_i32 = arith.constant 0 : i32
    %c0_i32_0 = arith.constant 0 : i32
    %c0_i32_1 = arith.constant 0 : i32
    return %c0_i32, %c0_i32_0 : i32, i32
  }
  func.func @transform_3(%arg0: i32, %arg1: i32) -> (i32, i32) {
    %c0_i32 = arith.constant 0 : i32
    %c0_i32_0 = arith.constant 0 : i32
    %c0_i32_1 = arith.constant 0 : i32
    return %c0_i32, %c0_i32_0 : i32, i32
  }
  func.func @transform_4(%arg0: i32, %arg1: i32) -> (i32, i32) {
    %c0_i32 = arith.constant 0 : i32
    %c0_i32_0 = arith.constant 0 : i32
    %c0_i32_1 = arith.constant 0 : i32
    return %c0_i32, %c0_i32_0 : i32, i32
  }
  func.func @transform_5(%arg0: i32, %arg1: i32) -> (i32, i32) {
    %c0_i32 = arith.constant 0 : i32
    return %arg0, %arg1 : i32, i32
  }
  func.func @transform_6(%arg0: i32, %arg1: i32) -> (i32, i32) {
    %c0_i32 = arith.constant 0 : i32
    return %arg0, %arg1 : i32, i32
  }
  func.func @transform_7(%arg0: i32, %arg1: i32) -> (i32, i32) {
    %c0_i32 = arith.constant 0 : i32
    %c0_i32_0 = arith.constant 0 : i32
    %c0_i32_1 = arith.constant 0 : i32
    return %c0_i32, %c0_i32_0 : i32, i32
  }
}

</mosaic_0001>

<llo_original>
// kernel: tpu_custom_call.1
$region0: #{tpu_custom_call.1}
  #allocation0 [shape = 'u32[]', space=smem, size = 0x4, offset = 0x4, fixed_abs, tag = 'smem constant byte address 0x4 - core index']
  #allocation1 [shape = 'u32[72,128]{1,0:T(1,128)}', space=vmem, size = 0x9000, scoped, tag = 'internal scratch']
  #allocation2 [shape = 'f32[1,1]{1,0:T(1,128)}', space=vmem, size = 0x200, scoped, tag = 'scratch operand']
  %s0 = inlined_call_operand.vmem [shape: f32[8,4], index: 0, kind: input, shape index: {}]
  %s1 = inlined_call_operand.vmem [shape: s32[8,1], index: 1, kind: input, shape index: {}]
  %s2 = inlined_call_operand.vmem [shape: f32[1,8], index: 2, kind: input, shape index: {}]
  %s3 = inlined_call_operand.vmem [shape: f32[1,8], index: 3, kind: input, shape index: {}]
  %s4 = inlined_call_operand.vmem [shape: s32[8,1], index: 4, kind: input, shape index: {}]
  %s5 = inlined_call_operand.vmem [shape: f32[8,16], index: 5, kind: input, shape index: {}]
  %s6 = inlined_call_operand.vmem [shape: f32[8,16], index: 6, kind: input, shape index: {}]
  %s7 = inlined_call_operand.hbm [shape: f32[1,128], index: 7, kind: output, shape index: {}]
  %s8 = sld [smem:[#allocation0]]
  $region46: #{tpu_custom_call.1} parent=0
    _
  %s10 = ssub.s32 1, %s8
  %s11 = scalar_select 0, %s10, %s8
  $region1: #{tpu_custom_call.1} parent=0
    #allocation3 [shape = 'u8[512]{0}', space=vmem, size = 0x400, scoped, tag = 'output window, operand 0, single buffered']
    #allocation4 [shape = 's32[1]{0}', space=sflag, size = 0x4, scoped, tag = 'scoped memory for tpu_custom_call.1']
    %12 = vsyncpa [#allocation4], 0
    // Predicated region
    $region2: #{tpu_custom_call.1} parent=1 // pred_check
      _
    $region3: #{tpu_custom_call.1} parent=1 // pred_check_branch
      %14 = sbr.rel (0) target = $region5
    $region4: #{tpu_custom_call.1} parent=1 // pred_region
      _
    $region5: #{tpu_custom_call.1} parent=1 // pred_fallthru
      _
    // Predicated region
    $region6: #{tpu_custom_call.1} parent=1 // pred_check
      _
    $region7: #{tpu_custom_call.1} parent=1 // pred_check_branch
      %16 = sbr.rel (0) target = $region9
    $region8: #{tpu_custom_call.1} parent=1 // pred_region
      _
    $region9: #{tpu_custom_call.1} parent=1 // pred_fallthru
      _
    // Predicated region
    $region10: #{tpu_custom_call.1} parent=1 // pred_check
      _
    $region11: #{tpu_custom_call.1} parent=1 // pred_check_branch
      %18 = sbr.rel (0) target = $region13
    $region12: #{tpu_custom_call.1} parent=1 // pred_region
      _
    $region13: #{tpu_custom_call.1} parent=1 // pred_fallthru
      _
    // Predicated region
    $region14: #{tpu_custom_call.1} parent=1 // pred_check
      _
    $region15: #{tpu_custom_call.1} parent=1 // pred_check_branch
      %20 = sbr.rel (0) target = $region17
    $region16: #{tpu_custom_call.1} parent=1 // pred_region
      _
    $region17: #{tpu_custom_call.1} parent=1 // pred_fallthru
      _
    // Predicated region
    $region18: #{tpu_custom_call.1} parent=1 // pred_check
      _
    $region19: #{tpu_custom_call.1} parent=1 // pred_check_branch
      %22 = sbr.rel (0) target = $region21
    $region20: #{tpu_custom_call.1} parent=1 // pred_region
      _
    $region21: #{tpu_custom_call.1} parent=1 // pred_fallthru
      _
    // Predicated region
    $region22: #{tpu_custom_call.1} parent=1 // pred_check
      _
    $region23: #{tpu_custom_call.1} parent=1 // pred_check_branch
      %24 = sbr.rel (0) target = $region25
    $region24: #{tpu_custom_call.1} parent=1 // pred_region
      _
    $region25: #{tpu_custom_call.1} parent=1 // pred_fallthru
      _
    // Predicated region
    $region26: #{tpu_custom_call.1} parent=1 // pred_check
      _
    $region27: #{tpu_custom_call.1} parent=1 // pred_check_branch
      %26 = sbr.rel (0) target = $region29
    $region28: #{tpu_custom_call.1} parent=1 // pred_region
      _
    $region29: #{tpu_custom_call.1} parent=1 // pred_fallthru
      _
    %p27 = scmp.eq.s32.totalorder 0, 0
    %p28 = scmp.eq.s32.totalorder 0, 0
    %p29 = pnand %p27, %p28
    %p30 = pneg %p29
    // Predicated region
    $region30: #{tpu_custom_call.1} parent=1 // pred_check
      _
    $region31: #{tpu_custom_call.1} parent=1 // pred_check_branch
      %32 = sbr.rel (%p29) target = $region33
    $region32: #{tpu_custom_call.1} parent=1 // pred_region
      %vm33 = vcmask 0
      %34 = vst.msk [vmem:[#allocation2] sm:$0x1] %vm33, 0.0
    $region33: #{tpu_custom_call.1} parent=1 // pred_fallthru
      _
    %v35 = vld [vmem:[%s5] sm:$0xff]
    %v36 = vld [vmem:[%s6] sm:$0xff]
    %v37 = vmax.f32 %v35, 0.0
    %v38 = vmul.f32 %v35, %v36
    %v39 = vsub.f32 %v37, %v38
    %v40 = vand.u32 2147483647, %v35
    %v41 = vsub.f32 0.0, %v40
    %v42 = vmul.f32 %v41, 1.442695
    %v43 = vpow.pop %v42
    %v44 = vadd.f32 %v43, 1.0
    %v45 = vlog2.pop %v44
    %v46 = vmul.f32 %v45, 0.6931472
    %v47 = vmul.f32 -0.5, %v43
    %v48 = vadd.f32 %v47, 1.0
    %v49 = vmul.f32 %v48, %v43
    %v50 = vand.u32 2147483647, %v43
    %vm51 = vcmp.lt.f32.partialorder %v50, 0.0004427343
    %v52 = vsel %vm51, %v49, %v46
    %v53 = vadd.f32 %v39, %v52
    %v54 = vld [vmem:[#allocation2] sm:$0x1]
    %vm55 = vcmask 130048
    %v56 = vsel %vm55, %v53, 0.0
    %57 = vadd.xlane.f32.xlu0 %v56
    %v58 = vpop.xlane.xlu0 %57
    %v59 = vrot.slane %v58, 4
    %v60 = vadd.f32 %v58, %v59
    %v61 = vrot.slane %v60, 2
    %v62 = vadd.f32 %v60, %v61
    %v63 = vrot.slane %v62, 1
    %v64 = vadd.f32 %v62, %v63
    %s65 = vtos %v64
    %v66 = vstv %s65
    %v67 = vadd.f32 %v54, %v66
    %vm68 = vcmask 0
    %69 = vst.msk [vmem:[#allocation2] sm:$0x1] %vm68, %v67
    // Predicated region
    $region34: #{tpu_custom_call.1} parent=1 // pred_check
      _
    $region35: #{tpu_custom_call.1} parent=1 // pred_check_branch
      %71 = sbr.rel (%p29) target = $region37
    $region36: #{tpu_custom_call.1} parent=1 // pred_region
      %v72 = vlaneseq
      %v73 = vand.u32 %v72, 127
      %v74 = vld [vmem:[%s0] sm:$0xff]
      %v75 = vld [vmem:[%s1] sm:$0xff]
      %vm76 = vcmask 31744
      %v77 = vsel %vm76, %v74, -inf
      %78 = vmax.xlane.f32.xlu0 %v77
      %v79 = vpop.xlane.xlu0 %78
      %v80 = vsub.f32 %v74, %v79
      %v81 = vmul.f32 %v80, 1.442695
      %v82 = vpow.pop %v81
      %v83 = vsel %vm76, %v82, 0.0
      %84 = vadd.xlane.f32.xlu0 %v83
      %v85 = vpop.xlane.xlu0 %84
      %86 = vset.pattern.permute.xlu0 0
      %87 = vperm.xlu0 %86, %v75
      %v88 = vpop.permute.xlu0 %87
      %vm89 = vcmp.eq.s32.totalorder %v73, %v88
      %v90 = vsel %vm89, 1, 0
      %v91 = vcvt.s32.f32 %v90
      %v92 = vmul.f32 %v74, %v91
      %v93 = vsel %vm76, %v92, 0.0
      %94 = vadd.xlane.f32.xlu0 %v93
      %v95 = vpop.xlane.xlu0 %94
      %v96 = vlog2.pop %v85
      %v97 = vmul.f32 %v96, 0.6931472
      %v98 = vadd.f32 %v97, %v79
      %v99 = vsub.f32 %v98, %v95
      %v100 = vmul.f32 %v82, %v91
      %v101 = vsel %vm76, %v100, 0.0
      %102 = vadd.xlane.f32.xlu0 %v101
      %v103 = vpop.xlane.xlu0 %102
      %v104 = vrcp.pop %v85
      %v105 = vmul.f32 %v103, %v104
      %v106 = vsub.f32 1.0, %v105
      %v107 = vmul.f32 %v106, %v106
      %v108 = vmul.f32 %v107, 0.25
      %v109 = vmul.f32 %v108, %v99
      %vm110 = vcmask 7168
      %v111 = vsel %vm110, %v99, 0.0
      %112 = vadd.xlane.f32.xlu0 %v111
      %v113 = vpop.xlane.xlu0 %112
      %v114 = vrot.slane %v113, 4
      %v115 = vadd.f32 %v113, %v114
      %v116 = vrot.slane %v115, 2
      %v117 = vadd.f32 %v115, %v116
      %v118 = vrot.slane %v117, 1
      %v119 = vadd.f32 %v117, %v118
      %s120 = vtos %v119
      %v121 = vstv %s120
      %v122 = vrcp.pop 8.0
      %v123 = vmul.f32 8.0, %v122
      %v124 = vsub.f32 1.0, %v123
      %v125 = vmul.f32 %v122, %v124
      %v126 = vadd.f32 %v122, %v125
      %vm127 = vweird.f32 %v122
      %v128 = vsel %vm127, %v122, %v126
      %v129 = vmul.f32 %v121, %v128
      %v130 = vmul.f32 %v129, 0.7
      %v131 = vsel %vm110, %v109, 0.0
      %132 = vadd.xlane.f32.xlu0 %v131
      %v133 = vpop.xlane.xlu0 %132
      %v134 = vrot.slane %v133, 4
      %v135 = vadd.f32 %v133, %v134
      %v136 = vrot.slane %v135, 2
      %v137 = vadd.f32 %v135, %v136
      %v138 = vrot.slane %v137, 1
      %v139 = vadd.f32 %v137, %v138
      %s140 = vtos %v139
      %v141 = vstv %s140
      %v142 = vmul.f32 %v141, %v128
      %v143 = vmul.f32 %v142, 0.3
      %v144 = vadd.f32 %v130, %v143
      %vm145 = vcmp.eq.s32.totalorder %v73, 0
      %v146 = vsel %vm145, %v144, 0.0
      %v147 = vadd.f32 %v144, 0.0
      %v148 = vld [vmem:[%s2] sm:$0x1]
      %v149 = vld [vmem:[%s3] sm:$0x1]
      %v150 = vld [vmem:[%s4] sm:$0xff]
      %v151 = vlaneseq
      %v152 = vshrl.u32 %v151, 7
      %v153 = vcvt.s32.f32 %v152
      %154 = vset.pattern.permute.xlu0 0
      %155 = vperm.xlu0 %154, %v150
      %v156 = vpop.permute.xlu0 %155
      %vm157 = vcmp.eq.s32.totalorder %v156, %v73
      %v158 = vsel %vm157, 1, 0
      %v159 = vcvt.s32.f32 %v158
      %v161 = vperm.slane %v148, 0
      %v163 = vmul.f32 %v161, %v159
      %vm164 = vcmask 64512
      %v165 = vsel %vm164, %v163, 0.0
      %166 = vadd.xlane.f32.xlu0 %v165
      %v167 = vpop.xlane.xlu0 %166
      %v169 = vperm.slane %v149, 0
      %v171 = vmul.f32 %v169, %v159
      %v172 = vsel %vm164, %v171, 0.0
      %173 = vadd.xlane.f32.xlu0 %v172
      %v174 = vpop.xlane.xlu0 %173
      %v175 = vmul.f32 %v153, %v159
      %v176 = vsel %vm164, %v175, 0.0
      %v177 = vrot.slane %v176, 4
      %v178 = vadd.f32 %v176, %v177
      %v179 = vrot.slane %v178, 2
      %v180 = vadd.f32 %v178, %v179
      %v181 = vrot.slane %v180, 1
      %v182 = vadd.f32 %v180, %v181
      %vm183 = vcmp.le.f32.partialorder %v182, %v153
      %v184 = vsel %vm183, 1, 0
      %v185 = vcvt.s32.f32 %v184
      %vm186 = vcmask 57344
      %v187 = vsel %vm186, %v148, -inf
      %188 = vmax.xlane.f32.xlu0 %v187
      %v189 = vpop.xlane.xlu0 %188
      %v190 = vrot.slane %v189, 4
      %v191 = vmax.f32 %v189, %v190
      %v192 = vrot.slane %v191, 2
      %v193 = vmax.f32 %v191, %v192
      %v194 = vrot.slane %v193, 1
      %v195 = vmax.f32 %v193, %v194
      %s196 = vtos %v195
      %v197 = vstv %s196
      %v198 = vsub.f32 %v148, %v197
      %v199 = vmul.f32 %v198, 1.442695
      %v200 = vpow.pop %v199
      %v202 = vperm.slane %v200, 0
      %v204 = vmul.f32 %v202, %v185
      %v205 = vsel %vm164, %v204, 0.0
      %206 = vadd.xlane.f32.xlu0 %v205
      %v207 = vpop.xlane.xlu0 %206
      %v208 = vlog2.pop %v207
      %v209 = vmul.f32 %v208, 0.6931472
      %v210 = vadd.f32 %v209, %v197
      %v211 = vsub.f32 %v167, %v210
      %v212 = vsel %vm186, %v149, 0.0
      %213 = vadd.xlane.f32.xlu0 %v212
      %v214 = vpop.xlane.xlu0 %213
      %v215 = vrot.slane %v214, 4
      %v216 = vadd.f32 %v214, %v215
      %v217 = vrot.slane %v216, 2
      %v218 = vadd.f32 %v216, %v217
      %v219 = vrot.slane %v218, 1
      %v220 = vadd.f32 %v218, %v219
      %s221 = vtos %v220
      %v222 = vstv %s221
      %v223 = vmul.f32 %v174, %v211
      %v224 = vsel %vm110, %v223, 0.0
      %225 = vadd.xlane.f32.xlu0 %v224
      %v226 = vpop.xlane.xlu0 %225
      %v227 = vrot.slane %v226, 4
      %v228 = vadd.f32 %v226, %v227
      %v229 = vrot.slane %v228, 2
      %v230 = vadd.f32 %v228, %v229
      %v231 = vrot.slane %v230, 1
      %v232 = vadd.f32 %v230, %v231
      %s233 = vtos %v232
      %v234 = vstv %s233
      %v235 = vsub.f32 0.0, %v234
      %v236 = vrcp.pop %v222
      %v237 = vmul.f32 %v222, %v236
      %v238 = vsub.f32 1.0, %v237
      %v239 = vmul.f32 %v236, %v238
      %v240 = vadd.f32 %v236, %v239
      %vm241 = vweird.f32 %v222
      %vm242 = vweird.f32 %v236
      %vm243 = vmor %vm241, %vm242
      %v244 = vsel %vm243, %v236, %v240
      %v245 = vand.u32 2147483647, %v222
      %vm246 = vcmp.eq.f32.partialorder %v245, 8.507059e+37
      %v247 = vand.u32 %v222, 2147483648
      %v248 = vor.u32 1.1754944e-38, %v247
      %v249 = vsel %vm246, %v248, %v244
      %v250 = vmul.f32 %v235, %v249
      %vm251 = vcmp.eq.s32.totalorder %v73, 1
      %v252 = vsel %vm251, %v250, %v146
      %v253 = vmul.f32 %v250, 0.2
      %v254 = vadd.f32 %v147, %v253
      %v255 = vld [vmem:[#allocation2] sm:$0x1]
      %v256 = vmul.f32 %v255, 0.0078125
      %vm257 = vcmp.eq.s32.totalorder %v73, 2
      %259 = vset.pattern.permute.xlu0 0
      %260 = vperm.xlu0 %259, %v256
      %v261 = vpop.permute.xlu0 %260
      %v263 = vperm.slane %v261, 0
      %v264 = vsel %vm257, %v263, %v252
      %v265 = vmul.f32 %v256, 0.2
      %v266 = vadd.f32 %v254, %v265
      %vm267 = vcmp.eq.s32.totalorder %v73, 3
      %269 = vset.pattern.permute.xlu0 0
      %270 = vperm.xlu0 %269, %v266
      %v271 = vpop.permute.xlu0 %270
      %v273 = vperm.slane %v271, 0
      %v274 = vsel %vm267, %v273, %v264
      %275 = vst [vmem:[#allocation3] sm:$0x1] %v274
    $region37: #{tpu_custom_call.1} parent=1 // pred_fallthru
      _
    // Predicated region
    $region38: #{tpu_custom_call.1} parent=1 // pred_check
      _
    $region39: #{tpu_custom_call.1} parent=1 // pred_check_branch
      %277 = sbr.rel (0) target = $region41
    $region40: #{tpu_custom_call.1} parent=1 // pred_region
      %279 = vsyncadd [#allocation4], 0
      %s281 = sshll.u32 [#allocation3], 4
      %s282 = int_to_ptr.vmem [resolvable:$true] %s281
      %s283 = sshll.u32 %s7, 4
      %s284 = int_to_ptr.hbm [resolvable:$true] %s283
      %286 = dma.vmem_to_hbm [thread:$0]  %s282, 16, %s284, [#allocation4]
    $region41: #{tpu_custom_call.1} parent=1 // pred_fallthru
      _
    // Predicated region
    $region42: #{tpu_custom_call.1} parent=1 // pred_check
      _
    $region43: #{tpu_custom_call.1} parent=1 // pred_check_branch
      %288 = sbr.rel (0) target = $region45
    $region44: #{tpu_custom_call.1} parent=1 // pred_region
      %290 = dma.done [#allocation4], 16
    $region45: #{tpu_custom_call.1} parent=1 // pred_fallthru
      _
    %291 = vsyncpa [#allocation4], 1

</llo_original>
